<compile_context>
chip_gen: v7x
topology: tpu7x:2x2x1
jax: 0.10.0
libtpu: 0.0.40
codegen_flags: <defaults>
</compile_context>

<pallas_src>
import functools

import jax
import jax.numpy as jnp
import numpy as np
from jax.experimental import pallas as pl
from jax.experimental.pallas import tpu as pltpu

EPS = 1e-5
_MIB = 1024 * 1024


def _cdiv(a, b):
    return -(-a // b)


def _round_up(a, b):
    return _cdiv(a, b) * b


def _largest_divisor_leq(m, cap):
    k = max(1, min(m, cap))
    while m % k:
        k -= 1
    return k


def _vmem_capacity_bytes():
    try:
        cap = int(pltpu.get_tpu_info().vmem_capacity_bytes)
        if cap > 0:
            return cap
    except Exception:
        pass
    return 64 * _MIB  # conservative default (v7x per-TensorCore)


def _num_tensorcores(cap):
    try:
        info = pltpu.get_tpu_info()
        for attr in ("num_cores", "core_count", "num_tensorcores", "tensorcore_count"):
            v = getattr(info, attr, None)
            if isinstance(v, int) and v > 0:
                return v
    except Exception:
        pass
    # Heuristic: 64-MiB-per-TensorCore parts (v7x) have 2 TensorCores per chip.
    return 2 if cap <= 64 * _MIB else 1


# --------------------------------------------------------------------------------------
# Kernels
# --------------------------------------------------------------------------------------
def _cbn_single_pass_kernel(x_ref, g_ref, b_ref, o_ref, *, n_reduce):
    """x_ref/o_ref: (B, F, Nt) (channel squeezed); g_ref/b_ref: (1, 1, Nt) f32.

    The whole (B, F) reduction extent is resident in VMEM, so a centered (two-pass)
    variance costs no extra HBM traffic and avoids the E[x^2]-E[x]^2 cancellation.
    """
    inv_n = jnp.float32(1.0 / n_reduce)
    mean = jnp.sum(jnp.sum(x_ref[...].astype(jnp.float32), axis=1, keepdims=True),
                   axis=0, keepdims=True) * inv_n                       # (1, 1, Nt)
    d = x_ref[...].astype(jnp.float32) - mean
    var = jnp.sum(jnp.sum(d * d, axis=1, keepdims=True),
                  axis=0, keepdims=True) * inv_n                        # biased variance
    inv = jax.lax.rsqrt(var + jnp.float32(EPS))
    scale = inv * g_ref[...]
    shift = b_ref[...] - mean * scale
    # Re-read x from VMEM at the store instead of keeping the f32 cast live throughout.
    o_ref[...] = (x_ref[...].astype(jnp.float32) * scale + shift).astype(o_ref.dtype)


def _cbn_stats_kernel(x_ref, g_ref, b_ref, scale_ref, shift_ref,
                      k_sc, s1_sc, s2_sc, *, n_reduce, f_total, f_chunk, needs_mask):
    """Pass 1 of the chunked path: accumulate shifted sum / sum-of-squares per node.

    x_ref: (B, Fc, N) (channel squeezed); grid axis 1 walks F chunks ("arbitrary").
    Shifted one-pass statistics (shift = first element of the channel block) keep the
    E[x^2]-E[x]^2 cancellation well conditioned.
    """
    f = pl.program_id(1)

    @pl.when(f == 0)
    def _init():
        k_sc[...] = x_ref[0:1, 0:1, :].astype(jnp.float32)
        s1_sc[...] = jnp.zeros_like(s1_sc)
        s2_sc[...] = jnp.zeros_like(s2_sc)

    xk = x_ref[...].astype(jnp.float32) - k_sc[...]
    if needs_mask:  # last F chunk may be partial: zero out-of-range frames
        idx = jax.lax.broadcasted_iota(jnp.int32, xk.shape, 1)
        xk = jnp.where(f * f_chunk + idx < f_total, xk, 0.0)
    s1_sc[...] += jnp.sum(jnp.sum(xk, axis=1, keepdims=True), axis=0, keepdims=True)
    s2_sc[...] += jnp.sum(jnp.sum(xk * xk, axis=1, keepdims=True), axis=0, keepdims=True)

    @pl.when(f == pl.num_programs(1) - 1)
    def _finalize():
        inv_n = jnp.float32(1.0 / n_reduce)
        m_shift = s1_sc[...] * inv_n                    # E[x - k]
        var = jnp.maximum(s2_sc[...] * inv_n - m_shift * m_shift, 0.0)
        mean = m_shift + k_sc[...]
        inv = jax.lax.rsqrt(var + jnp.float32(EPS))
        scale = inv * g_ref[...]
        scale_ref[...] = scale
        shift_ref[...] = b_ref[...] - mean * scale


def _cbn_apply_kernel(x_ref, scale_ref, shift_ref, o_ref):
    """Pass 2 of the chunked path: o = x * scale + shift (folded affine)."""
    o_ref[...] = (x_ref[...].astype(jnp.float32) * scale_ref[...]
                  + shift_ref[...]).astype(o_ref.dtype)


# --------------------------------------------------------------------------------------
# Wrapper
# --------------------------------------------------------------------------------------
def channelwise_batchnorm(x, gamma, beta, *, block_budget_override=None):
    """x: (B, C, F, N); gamma, beta: (C*N,) ordered as feature = c*N + n."""
    B, C, F, N = x.shape
    n_reduce = B * F
    itemsize = int(np.dtype(x.dtype).itemsize)
    packing = {4: 8, 2: 16, 1: 32}.get(itemsize, 8)      # sublane packing per dtype

    g3 = gamma.astype(jnp.float32).reshape(C, 1, N)
    b3 = beta.astype(jnp.float32).reshape(C, 1, N)

    cap = _vmem_capacity_bytes()
    num_cores = _num_tensorcores(cap)
    vmem_limit = int(max(min(cap - 12 * _MIB, 96 * _MIB), 32 * _MIB))
    block_budget = int(max(min(vmem_limit - 4 * _MIB, 64 * _MIB), 8 * _MIB))
    if block_budget_override is not None:
        block_budget = int(min(block_budget, block_budget_override))

    # Per node-column bytes: in+out double-buffered blocks + ~1 f32 kernel temporary.
    bytes_per_lane = B * F * (4 * itemsize + 8)

    # ---------------- single-pass path: one (B, F, Nt) block per (channel, node chunk) --
    single_nt = None
    if N % 128 == 0:
        m = N // 128
        max_k = block_budget // (128 * bytes_per_lane)
        if max_k >= 1:
            k = _largest_divisor_leq(m, int(max_k))
            if num_cores > 1:                            # >=2 blocks per TensorCore (v7x)
                target = 2 * num_cores
                while C * (m // k) < target and k > 1:
                    k = _largest_divisor_leq(m, k - 1)
            single_nt = 128 * k
    elif bytes_per_lane * N <= block_budget:
        single_nt = N                                    # full-dim block: legal for any N

    if single_nt is not None:
        Nt = single_nt
        n_chunks = N // Nt
        kernel = functools.partial(_cbn_single_pass_kernel, n_reduce=n_reduce)
        return pl.pallas_call(
            kernel,
            out_shape=jax.ShapeDtypeStruct((B, C, F, N), x.dtype),
            grid=(C, n_chunks),
            in_specs=[
                pl.BlockSpec((B, None, F, Nt), lambda c, nb: (0, c, 0, nb)),
                pl.BlockSpec((1, 1, Nt), lambda c, nb: (c, 0, nb)),
                pl.BlockSpec((1, 1, Nt), lambda c, nb: (c, 0, nb)),
            ],
            out_specs=pl.BlockSpec((B, None, F, Nt), lambda c, nb: (0, c, 0, nb)),
            compiler_params=pltpu.CompilerParams(
                dimension_semantics=("parallel", "parallel"),
                vmem_limit_bytes=vmem_limit),
        )(x, g3, b3)

    # ---------------- two-pass path: F-chunked stats sweep, then apply sweep ------------
    # ~2 reads + 1 write of x; used when a whole (B, F, N) channel block exceeds VMEM.
    row_bytes = B * N * (4 * itemsize + 8)               # bytes per frame of a chunk block
    max_fc = block_budget // max(row_bytes, 1)
    fc = max(packing, (max_fc // packing) * packing)
    fc = min(fc, _round_up(F, packing))
    # TODO(synk): if even a (B, packing, N) block exceeds VMEM (enormous B*N), the
    # two-pass path would additionally need node chunking; not implemented.
    f_chunks = _cdiv(F, fc)
    needs_mask = (F % fc) != 0

    stats_kernel = functools.partial(
        _cbn_stats_kernel, n_reduce=n_reduce, f_total=F, f_chunk=fc, needs_mask=needs_mask)
    scale, shift = pl.pallas_call(
        stats_kernel,
        out_shape=(jax.ShapeDtypeStruct((C, 1, N), jnp.float32),
                   jax.ShapeDtypeStruct((C, 1, N), jnp.float32)),
        grid=(C, f_chunks),
        in_specs=[
            pl.BlockSpec((B, None, fc, N), lambda c, f: (0, c, f, 0)),
            pl.BlockSpec((1, 1, N), lambda c, f: (c, 0, 0)),
            pl.BlockSpec((1, 1, N), lambda c, f: (c, 0, 0)),
        ],
        out_specs=(pl.BlockSpec((1, 1, N), lambda c, f: (c, 0, 0)),
                   pl.BlockSpec((1, 1, N), lambda c, f: (c, 0, 0))),
        scratch_shapes=[pltpu.VMEM((1, 1, N), jnp.float32),
                        pltpu.VMEM((1, 1, N), jnp.float32),
                        pltpu.VMEM((1, 1, N), jnp.float32)],
        compiler_params=pltpu.CompilerParams(
            dimension_semantics=("parallel", "arbitrary"),
            vmem_limit_bytes=vmem_limit),
    )(x, g3, b3)

    return pl.pallas_call(
        _cbn_apply_kernel,
        out_shape=jax.ShapeDtypeStruct((B, C, F, N), x.dtype),
        grid=(C, f_chunks),
        in_specs=[
            pl.BlockSpec((B, None, fc, N), lambda c, f: (0, c, f, 0)),
            pl.BlockSpec((1, 1, N), lambda c, f: (c, 0, 0)),
            pl.BlockSpec((1, 1, N), lambda c, f: (c, 0, 0)),
        ],
        out_specs=pl.BlockSpec((B, None, fc, N), lambda c, f: (0, c, f, 0)),
        compiler_params=pltpu.CompilerParams(
            dimension_semantics=("parallel", "parallel"),
            vmem_limit_bytes=vmem_limit),
    )(x, scale, shift)


# --------------------------------------------------------------------------------------
# Pure-JAX reference (mirrors the PyTorch forward in training mode)
# --------------------------------------------------------------------------------------
def _reference(x, gamma, beta):
    B, C, F, N = x.shape
    x2 = jnp.transpose(x, (0, 1, 3, 2)).reshape(B, C * N, F).astype(jnp.float32)
    mean = jnp.mean(x2, axis=(0, 2), keepdims=True)
    var = jnp.mean((x2 - mean) ** 2, axis=(0, 2), keepdims=True)
    y = (x2 - mean) / jnp.sqrt(var + EPS)
    y = y * gamma.astype(jnp.float32)[None, :, None] + beta.astype(jnp.float32)[None, :, None]
    y = y.reshape(B, C, N, F)
    return jnp.transpose(y, (0, 1, 3, 2)).astype(x.dtype)


if __name__ == "__main__":
    fn = jax.jit(channelwise_batchnorm, static_argnames=("block_budget_override",))

    # Case 1: module-default affine (weight=1, bias=0); N < 128 -> single-pass full-N block.
    B, C, F, N = 2, 4, 16, 16
    x = jax.random.normal(jax.random.PRNGKey(0), (B, C, F, N), dtype=jnp.float32)
    gamma = jnp.ones((C * N,), dtype=jnp.float32)
    beta = jnp.zeros((C * N,), dtype=jnp.float32)
    out = jax.block_until_ready(fn(x, gamma, beta))
    np.testing.assert_allclose(np.asarray(out), np.asarray(_reference(x, gamma, beta)),
                               rtol=1e-5, atol=1e-5)

    # Case 2: non-trivial affine; N % 128 == 0 -> single-pass node-chunked variant.
    B2, C2, F2, N2 = 2, 2, 16, 128
    k1, k2, k3 = jax.random.split(jax.random.PRNGKey(0), 3)
    x2 = jax.random.normal(k1, (B2, C2, F2, N2), dtype=jnp.float32)
    gamma2 = jax.random.normal(k2, (C2 * N2,), dtype=jnp.float32)
    beta2 = jax.random.normal(k3, (C2 * N2,), dtype=jnp.float32)
    out2 = jax.block_until_ready(fn(x2, gamma2, beta2))
    np.testing.assert_allclose(np.asarray(out2), np.asarray(_reference(x2, gamma2, beta2)),
                               rtol=1e-5, atol=1e-5)

    # Case 3: force the two-pass (F-chunked) path with a tiny block budget; uneven chunks
    # exercise the masked partial-chunk statistics.
    B3, C3, F3, N3 = 2, 3, 44, 24
    k4, k5, k6 = jax.random.split(jax.random.PRNGKey(1), 3)
    x3 = jax.random.normal(k4, (B3, C3, F3, N3), dtype=jnp.float32)
    gamma3 = jax.random.normal(k5, (C3 * N3,), dtype=jnp.float32)
    beta3 = jax.random.normal(k6, (C3 * N3,), dtype=jnp.float32)
    out3 = jax.block_until_ready(fn(x3, gamma3, beta3, block_budget_override=16 * 1024))
    np.testing.assert_allclose(np.asarray(out3), np.asarray(_reference(x3, gamma3, beta3)),
                               rtol=1e-5, atol=2e-5)

    print("KERNEL_OK")
</pallas_src>

<mosaic_0001>
module attributes {stable_mosaic.version = 11 : i64} {
  func.func @_cbn_single_pass_kernel(%arg0: i32, %arg1: i32, %arg2: memref<2x1x16x16xf32, #tpu.memory_space<vmem>>, %arg3: memref<1x1x16xf32, #tpu.memory_space<vmem>>, %arg4: memref<1x1x16xf32, #tpu.memory_space<vmem>>, %arg5: memref<2x1x16x16xf32, #tpu.memory_space<vmem>>) attributes {dimension_semantics = [#tpu.dimension_semantics<parallel>, #tpu.dimension_semantics<parallel>], iteration_bounds = array<i64: 4, 1>, scalar_prefetch = 0 : i64, scratch_operands = 0 : i64, tpu.core_type = #tpu.core_type<tc>, window_params = [{transform_indices = @transform_0, window_bounds = array<i64: 2, 1, 16, 16>}, {transform_indices = @transform_1, window_bounds = array<i64: 1, 1, 16>}, {transform_indices = @transform_2, window_bounds = array<i64: 1, 1, 16>}, {transform_indices = @transform_3, window_bounds = array<i64: 2, 1, 16, 16>}]} {
    %c0 = arith.constant 0 : index
    %c0_0 = arith.constant 0 : index
    %c0_1 = arith.constant 0 : index
    %c0_2 = arith.constant 0 : index
    %0 = vector.load %arg2[%c0, %c0_0, %c0_1, %c0_2] : memref<2x1x16x16xf32, #tpu.memory_space<vmem>>, vector<2x1x16x16xf32>
    %1 = vector.shape_cast %0 : vector<2x1x16x16xf32> to vector<2x16x16xf32>
    %cst = arith.constant dense<0.000000e+00> : vector<2x16xf32>
    %2 = vector.multi_reduction <add>, %1, %cst [1] : vector<2x16x16xf32> to vector<2x16xf32>
    %3 = vector.shape_cast %2 : vector<2x16xf32> to vector<2x1x16xf32>
    %cst_3 = arith.constant dense<0.000000e+00> : vector<1x16xf32>
    %4 = vector.multi_reduction <add>, %3, %cst_3 [0] : vector<2x1x16xf32> to vector<1x16xf32>
    %5 = vector.shape_cast %4 : vector<1x16xf32> to vector<1x1x16xf32>
    %cst_4 = arith.constant 3.125000e-02 : f32
    %6 = vector.broadcast %cst_4 : f32 to vector<1x1x16xf32>
    %7 = arith.mulf %5, %6 : vector<1x1x16xf32>
    %c0_5 = arith.constant 0 : index
    %c0_6 = arith.constant 0 : index
    %c0_7 = arith.constant 0 : index
    %c0_8 = arith.constant 0 : index
    %8 = vector.load %arg2[%c0_5, %c0_6, %c0_7, %c0_8] : memref<2x1x16x16xf32, #tpu.memory_space<vmem>>, vector<2x1x16x16xf32>
    %9 = vector.shape_cast %8 : vector<2x1x16x16xf32> to vector<2x16x16xf32>
    %10 = vector.broadcast %7 : vector<1x1x16xf32> to vector<2x16x16xf32>
    %11 = arith.subf %9, %10 : vector<2x16x16xf32>
    %12 = arith.mulf %11, %11 : vector<2x16x16xf32>
    %cst_9 = arith.constant dense<0.000000e+00> : vector<2x16xf32>
    %13 = vector.multi_reduction <add>, %12, %cst_9 [1] : vector<2x16x16xf32> to vector<2x16xf32>
    %14 = vector.shape_cast %13 : vector<2x16xf32> to vector<2x1x16xf32>
    %cst_10 = arith.constant dense<0.000000e+00> : vector<1x16xf32>
    %15 = vector.multi_reduction <add>, %14, %cst_10 [0] : vector<2x1x16xf32> to vector<1x16xf32>
    %16 = vector.shape_cast %15 : vector<1x16xf32> to vector<1x1x16xf32>
    %cst_11 = arith.constant 3.125000e-02 : f32
    %17 = vector.broadcast %cst_11 : f32 to vector<1x1x16xf32>
    %18 = arith.mulf %16, %17 : vector<1x1x16xf32>
    %cst_12 = arith.constant 9.99999974E-6 : f32
    %19 = vector.broadcast %cst_12 : f32 to vector<1x1x16xf32>
    %20 = arith.addf %18, %19 : vector<1x1x16xf32>
    %21 = math.rsqrt %20 : vector<1x1x16xf32>
    %c0_13 = arith.constant 0 : index
    %c0_14 = arith.constant 0 : index
    %c0_15 = arith.constant 0 : index
    %22 = vector.load %arg3[%c0_13, %c0_14, %c0_15] : memref<1x1x16xf32, #tpu.memory_space<vmem>>, vector<1x1x16xf32>
    %23 = arith.mulf %21, %22 : vector<1x1x16xf32>
    %c0_16 = arith.constant 0 : index
    %c0_17 = arith.constant 0 : index
    %c0_18 = arith.constant 0 : index
    %24 = vector.load %arg4[%c0_16, %c0_17, %c0_18] : memref<1x1x16xf32, #tpu.memory_space<vmem>>, vector<1x1x16xf32>
    %25 = arith.mulf %7, %23 : vector<1x1x16xf32>
    %26 = arith.subf %24, %25 : vector<1x1x16xf32>
    %c0_19 = arith.constant 0 : index
    %c0_20 = arith.constant 0 : index
    %c0_21 = arith.constant 0 : index
    %c0_22 = arith.constant 0 : index
    %27 = vector.load %arg2[%c0_19, %c0_20, %c0_21, %c0_22] : memref<2x1x16x16xf32, #tpu.memory_space<vmem>>, vector<2x1x16x16xf32>
    %28 = vector.shape_cast %27 : vector<2x1x16x16xf32> to vector<2x16x16xf32>
    %29 = vector.broadcast %23 : vector<1x1x16xf32> to vector<2x16x16xf32>
    %30 = arith.mulf %28, %29 : vector<2x16x16xf32>
    %31 = vector.broadcast %26 : vector<1x1x16xf32> to vector<2x16x16xf32>
    %32 = arith.addf %30, %31 : vector<2x16x16xf32>
    %c0_23 = arith.constant 0 : index
    %c0_24 = arith.constant 0 : index
    %c0_25 = arith.constant 0 : index
    %c0_26 = arith.constant 0 : index
    %33 = vector.load %arg5[%c0_23, %c0_24, %c0_25, %c0_26] : memref<2x1x16x16xf32, #tpu.memory_space<vmem>>, vector<2x1x16x16xf32>
    %34 = vector.shape_cast %33 : vector<2x1x16x16xf32> to vector<2x16x16xf32>
    %35 = vector.shape_cast %32 : vector<2x16x16xf32> to vector<2x1x16x16xf32>
    tpu.vector_store %arg5[%c0_23, %c0_24, %c0_25, %c0_26], %35 {strides = array<i32>} : memref<2x1x16x16xf32, #tpu.memory_space<vmem>>, vector<2x1x16x16xf32>,
    return
  }
  func.func @transform_0(%arg0: i32, %arg1: i32) -> (i32, i32, i32, i32) {
    %c0_i32 = arith.constant 0 : i32
    %c0_i32_0 = arith.constant 0 : i32
    %c0_i32_1 = arith.constant 0 : i32
    return %c0_i32, %arg0, %c0_i32_0, %arg1 : i32, i32, i32, i32
  }
  func.func @transform_1(%arg0: i32, %arg1: i32) -> (i32, i32, i32) {
    %c0_i32 = arith.constant 0 : i32
    %c0_i32_0 = arith.constant 0 : i32
    return %arg0, %c0_i32, %arg1 : i32, i32, i32
  }
  func.func @transform_2(%arg0: i32, %arg1: i32) -> (i32, i32, i32) {
    %c0_i32 = arith.constant 0 : i32
    %c0_i32_0 = arith.constant 0 : i32
    return %arg0, %c0_i32, %arg1 : i32, i32, i32
  }
  func.func @transform_3(%arg0: i32, %arg1: i32) -> (i32, i32, i32, i32) {
    %c0_i32 = arith.constant 0 : i32
    %c0_i32_0 = arith.constant 0 : i32
    %c0_i32_1 = arith.constant 0 : i32
    return %c0_i32, %arg0, %c0_i32_0, %arg1 : i32, i32, i32, i32
  }
}

</mosaic_0001>

<llo_original>
// kernel: channelwise_batchnorm.1
$region0: #{channelwise_batchnorm.1}
  #allocation0 [shape = 'u32[]', space=smem, size = 0x4, offset = 0x4, fixed_abs, tag = 'smem constant byte address 0x4 - core index']
  #allocation1 [shape = 'u32[144,128]{1,0:T(1,128)}', space=vmem, size = 0x12000, scoped, tag = 'internal scratch']
  #allocation6 [shape = 's32[]', space=sflag, size = 0x4, offset = 0, fixed_abs, tag = 'sflag constant byte address 0x0 - dummy sync flag']
  #allocation8 [shape = 's32[]', space=sflag, size = 0x4, offset = 0, fixed_abs, tag = 'sflag constant byte address 0x0 - dummy sync flag']
  %s0 = inlined_call_operand.hbm [shape: f32[2,4,16,16], index: 0, kind: input, shape index: {}]
  %s1 = inlined_call_operand.vmem [shape: f32[4,1,16], index: 1, kind: input, shape index: {}]
  %s2 = inlined_call_operand.vmem [shape: f32[4,1,16], index: 2, kind: input, shape index: {}]
  %s3 = inlined_call_operand.hbm [shape: f32[2,4,16,16], index: 3, kind: output, shape index: {}]
  %s4 = sld [smem:[#allocation0]]
  $region49: #{channelwise_batchnorm.1} parent=0
    _
  %s6 = ssub.s32 1, %s4
  %s7 = scalar_select 0, %s6, %s4
  $region1: #{channelwise_batchnorm.1} parent=0
    #allocation2 [shape = 'u8[32768]{0}', space=vmem, size = 0x8000, scoped, tag = 'input window, operand 0']
    #allocation3 [shape = 's32[2]{0}', space=sflag, size = 0x8, scoped, tag = 'scoped memory for channelwise_batchnorm.1']
    #allocation4 [shape = 's32[2]{0}', space=sflag, size = 0x8, scoped, tag = 'scoped memory for channelwise_batchnorm.1']
    #allocation5 [shape = 'u8[32768]{0}', space=vmem, size = 0x8000, scoped, tag = 'output window, operand 0']
    %8 = vsyncpa [#allocation3], 0
    %s9 = scalar_lea.sflag [#allocation3], 1
    %10 = vsyncpa %s9, 0
    %11 = vsyncpa [#allocation4], 0
    %s12 = scalar_lea.sflag [#allocation4], 1
    %13 = vsyncpa %s12, 0
    loop: start=0, step=1, limit=6
    $region2: #{channelwise_batchnorm.1} parent=1 // loop_pre_header
      _
    $region3: #{channelwise_batchnorm.1} parent=1 // loop_header
      %s15 = sphi 0, %s19
      %p16 = scmp.ge.s32.totalorder %s15, 6
      %s22 = sphi 0, %s34
      %s23 = sphi 0, %s30
      %s24 = sphi 0, %s22
      %s25 = sphi 0, %s23
      %s26 = sphi 0, %s24
      %s27 = sphi 0, %s25
      %s39 = sphi 0, %s41
      %s42 = sphi 0, %s39
      %s43 = sphi 0, %s42
      %s59 = sphi 0, %s43
      %s67 = sphi 0, %s69
      %s70 = sphi 0, %s67
      %s71 = sphi 0, %s70
      %s87 = sphi 0, %s71
      %s95 = sphi 0, %s97
      %s98 = sphi 0, %s95
      %s99 = sphi 0, %s98
      %s115 = sphi 0, %s99
      %s123 = sphi 0, %s125
      %s126 = sphi 0, %s123
      %s127 = sphi 0, %s126
      %s143 = sphi 0, %s127
    $region4: #{channelwise_batchnorm.1} parent=1 // loop_header_branch
      %18 = sbr.rel (%p16) target = $region8
    $region5: #{channelwise_batchnorm.1} parent=1 // loop_body
      %s20 = ssub.s32 %s15, 1
      %s21 = ssub.s32 %s15, 2
      %s28 = sadd.s32 1, %s23
      %p29 = scmp.ge.s32.totalorder %s28, 1
      %s30 = scalar_select %p29, 0, %s28
      %s31 = sadd.s32 1, %s22
      %s32 = scalar_select %p29, %s31, %s22
      %p33 = scmp.ge.s32.totalorder %s32, 4
      %s34 = scalar_select %p33, 0, %s32
      %s35 = ssub.s32 %s22, %s34
      %s36 = ssub.s32 %s23, %s30
      %s37 = sor.u32 %s35, %s36
      %p38 = scmp.eq.s32.totalorder %s37, 0
      %s40 = sadd.s32 %s39, 1
      %s41 = scalar_select %p38, %s39, %s40
      %p44 = pneg %p38
      %p45 = scmp.eq.s32.totalorder %s15, 3
      %p46 = por %p44, %p45
      %p47 = scmp.ne.s32.totalorder %s39, %s42
      %p48 = scmp.eq.s32.totalorder %s15, 0
      %p49 = por %p47, %p48
      %p50 = scmp.ne.s32.totalorder %s39, %s42
      %p51 = scmp.eq.s32.totalorder %s20, 3
      %p52 = por %p50, %p51
      %p53 = scmp.ne.s32.totalorder %s42, %s43
      %p54 = scmp.eq.s32.totalorder %s20, 0
      %p55 = por %p53, %p54
      %p56 = scmp.ne.s32.totalorder %s42, %s43
      %p57 = scmp.eq.s32.totalorder %s21, 3
      %p58 = por %p56, %p57
      %p60 = scmp.ne.s32.totalorder %s43, %s59
      %p61 = scmp.eq.s32.totalorder %s21, 0
      %p62 = por %p60, %p61
      %s63 = ssub.s32 %s22, %s34
      %s64 = ssub.s32 %s23, %s30
      %s65 = sor.u32 %s63, %s64
      %p66 = scmp.eq.s32.totalorder %s65, 0
      %s68 = sadd.s32 %s67, 1
      %s69 = scalar_select %p66, %s67, %s68
      %p72 = pneg %p66
      %p73 = scmp.eq.s32.totalorder %s15, 3
      %p74 = por %p72, %p73
      %p75 = scmp.ne.s32.totalorder %s67, %s70
      %p76 = scmp.eq.s32.totalorder %s15, 0
      %p77 = por %p75, %p76
      %p78 = scmp.ne.s32.totalorder %s67, %s70
      %p79 = scmp.eq.s32.totalorder %s20, 3
      %p80 = por %p78, %p79
      %p81 = scmp.ne.s32.totalorder %s70, %s71
      %p82 = scmp.eq.s32.totalorder %s20, 0
      %p83 = por %p81, %p82
      %p84 = scmp.ne.s32.totalorder %s70, %s71
      %p85 = scmp.eq.s32.totalorder %s21, 3
      %p86 = por %p84, %p85
      %p88 = scmp.ne.s32.totalorder %s71, %s87
      %p89 = scmp.eq.s32.totalorder %s21, 0
      %p90 = por %p88, %p89
      %s91 = ssub.s32 %s22, %s34
      %s92 = ssub.s32 %s23, %s30
      %s93 = sor.u32 %s91, %s92
      %p94 = scmp.eq.s32.totalorder %s93, 0
      %s96 = sadd.s32 %s95, 1
      %s97 = scalar_select %p94, %s95, %s96
      %p100 = pneg %p94
      %p101 = scmp.eq.s32.totalorder %s15, 3
      %p102 = por %p100, %p101
      %p103 = scmp.ne.s32.totalorder %s95, %s98
      %p104 = scmp.eq.s32.totalorder %s15, 0
      %p105 = por %p103, %p104
      %p106 = scmp.ne.s32.totalorder %s95, %s98
      %p107 = scmp.eq.s32.totalorder %s20, 3
      %p108 = por %p106, %p107
      %p109 = scmp.ne.s32.totalorder %s98, %s99
      %p110 = scmp.eq.s32.totalorder %s20, 0
      %p111 = por %p109, %p110
      %p112 = scmp.ne.s32.totalorder %s98, %s99
      %p113 = scmp.eq.s32.totalorder %s21, 3
      %p114 = por %p112, %p113
      %p116 = scmp.ne.s32.totalorder %s99, %s115
      %p117 = scmp.eq.s32.totalorder %s21, 0
      %p118 = por %p116, %p117
      %s119 = ssub.s32 %s22, %s34
      %s120 = ssub.s32 %s23, %s30
      %s121 = sor.u32 %s119, %s120
      %p122 = scmp.eq.s32.totalorder %s121, 0
      %s124 = sadd.s32 %s123, 1
      %s125 = scalar_select %p122, %s123, %s124
      %p128 = pneg %p122
      %p129 = scmp.eq.s32.totalorder %s15, 3
      %p130 = por %p128, %p129
      %p131 = scmp.ne.s32.totalorder %s123, %s126
      %p132 = scmp.eq.s32.totalorder %s15, 0
      %p133 = por %p131, %p132
      %p134 = scmp.ne.s32.totalorder %s123, %s126
      %p135 = scmp.eq.s32.totalorder %s20, 3
      %p136 = por %p134, %p135
      %p137 = scmp.ne.s32.totalorder %s126, %s127
      %p138 = scmp.eq.s32.totalorder %s20, 0
      %p139 = por %p137, %p138
      %p140 = scmp.ne.s32.totalorder %s126, %s127
      %p141 = scmp.eq.s32.totalorder %s21, 3
      %p142 = por %p140, %p141
      %p144 = scmp.ne.s32.totalorder %s127, %s143
      %p145 = scmp.eq.s32.totalorder %s21, 0
      %p146 = por %p144, %p145
      %p147 = scmp.le.s32.totalorder 1, %s15
      %p148 = scmp.lt.s32.totalorder %s15, 5
      %p149 = pnand %p147, %p148
      %p150 = pneg %p149
      // Predicated region
      $region9: #{channelwise_batchnorm.1} parent=5 // pred_check
        _
      $region10: #{channelwise_batchnorm.1} parent=5 // pred_check_branch
        %152 = sbr.rel (%p149) target = $region12
      $region11: #{channelwise_batchnorm.1} parent=5 // pred_region
        %s153 = ssub.s32 %s15, 1
      $region12: #{channelwise_batchnorm.1} parent=5 // pred_fallthru
        _
      %p154 = scmp.lt.s32.totalorder %s15, 4
      // Predicated region
      $region13: #{channelwise_batchnorm.1} parent=5 // pred_check
        %p155 = pneg %p154
      $region14: #{channelwise_batchnorm.1} parent=5 // pred_check_branch
        %157 = sbr.rel (%p155) target = $region16
      $region15: #{channelwise_batchnorm.1} parent=5 // pred_region
        // Predicated region
        $region17: #{channelwise_batchnorm.1} parent=15 // pred_check
          %p158 = pneg %p49
        $region18: #{channelwise_batchnorm.1} parent=15 // pred_check_branch
          %160 = sbr.rel (%p158) target = $region20
        $region19: #{channelwise_batchnorm.1} parent=15 // pred_region
          #allocation7 [shape = 'u32[6]{0}', space=smem, size = 0x18, scoped, tag = 'DMA stride descriptor']
          %s161 = sand.u32 %s39, 1
          %s162 = scalar_lea.sflag [#allocation3], %s161
          %s163 = sand.u32 %s39, 1
          %s164 = smul.addr %s163, 32
          %s165 = scalar_lea.vmem [#allocation2], %s164
          %s167 = ssub.s32 512, 512
          %168 = vsyncadd %s162, %s167
          %s169 = smul.addr %s22, 2
          %s170 = sadd.s32 %s23, %s169
          %s171 = smul.addr %s170, 128
          %s172 = scalar_lea.hbm %s0, %s171
          %s174 = sshll.u32 1, 14
          %s175 = sxor.u32 4294967295, %s174
          %s177 = sld [smem:[#allocation0]]
          %s178 = sadd.s32 2, %s177
          %s180 = sshll.u32 7, 26
          %s181 = sxor.u32 4294967295, %s180
          %s182 = sand.u32 0, %s181
          %s183 = sshll.u32 %s178, 26
          %s184 = sor.u32 %s182, %s183
          %s185 = sshll.u32 %s165, 4
          %s186 = int_to_ptr.vmem [resolvable:$true] %s185
          %192 = sst [smem:[#allocation7]] 1024
          %s193 = scalar_lea.smem [#allocation7], 1
          %194 = sst [smem:[%s193]] 256
          %s195 = scalar_lea.smem [#allocation7], 2
          %196 = sst [smem:[%s195]] 2
          %s197 = scalar_lea.smem [#allocation7], 3
          %198 = sst [smem:[%s197]] 128
          %s199 = scalar_lea.smem [#allocation7], 4
          %200 = sst [smem:[%s199]] 128
          %s201 = scalar_lea.smem [#allocation7], 5
          %202 = sst [smem:[%s201]] 8
          %204 = dma.general %s172, 512, %s186, %s162, [#allocation6], [#allocation7], %s184, 0
        $region20: #{channelwise_batchnorm.1} parent=15 // pred_fallthru
          _
        // Predicated region
        $region21: #{channelwise_batchnorm.1} parent=15 // pred_check
          %p205 = pneg %p77
        $region22: #{channelwise_batchnorm.1} parent=15 // pred_check_branch
          %207 = sbr.rel (%p205) target = $region24
        $region23: #{channelwise_batchnorm.1} parent=15 // pred_region
          %p208 = scmp.lt.s32.totalorder %s22, 3
          %s209 = scalar_select %p208, %s22, 3
          %p210 = scmp.lt.s32.totalorder %s23, 0
          %s211 = scalar_select %p210, %s23, 0
          %s212 = sadd.s32 %s211, %s209
          %s213 = scalar_lea.vmem %s1, %s212
        $region24: #{channelwise_batchnorm.1} parent=15 // pred_fallthru
          _
        // Predicated region
        $region25: #{channelwise_batchnorm.1} parent=15 // pred_check
          %p214 = pneg %p105
        $region26: #{channelwise_batchnorm.1} parent=15 // pred_check_branch
          %216 = sbr.rel (%p214) target = $region28
        $region27: #{channelwise_batchnorm.1} parent=15 // pred_region
          %p217 = scmp.lt.s32.totalorder %s22, 3
          %s218 = scalar_select %p217, %s22, 3
          %p219 = scmp.lt.s32.totalorder %s23, 0
          %s220 = scalar_select %p219, %s23, 0
          %s221 = sadd.s32 %s220, %s218
          %s222 = scalar_lea.vmem %s2, %s221
        $region28: #{channelwise_batchnorm.1} parent=15 // pred_fallthru
          _
      $region16: #{channelwise_batchnorm.1} parent=5 // pred_fallthru
        _
      %p223 = scmp.le.s32.totalorder 1, %s15
      %p224 = scmp.lt.s32.totalorder %s15, 5
      %p225 = pnand %p223, %p224
      %p226 = pneg %p225
      // Predicated region
      $region29: #{channelwise_batchnorm.1} parent=5 // pred_check
        _
      $region30: #{channelwise_batchnorm.1} parent=5 // pred_check_branch
        %228 = sbr.rel (%p225) target = $region32
      $region31: #{channelwise_batchnorm.1} parent=5 // pred_region
        %s229 = ssub.s32 %s15, 1
        %s230 = sand.u32 %s42, 1
        %s231 = scalar_lea.sflag [#allocation3], %s230
        %s232 = sand.u32 %s42, 1
        %s233 = smul.addr %s232, 32
        %s234 = scalar_lea.vmem [#allocation2], %s233
        // Predicated region
        $region33: #{channelwise_batchnorm.1} parent=31 // pred_check
          %p235 = pneg %p55
        $region34: #{channelwise_batchnorm.1} parent=31 // pred_check_branch
          %237 = sbr.rel (%p235) target = $region36
        $region35: #{channelwise_batchnorm.1} parent=31 // pred_region
          %238 = dma.done %s231, 512
        $region36: #{channelwise_batchnorm.1} parent=31 // pred_fallthru
          _
        %s239 = sand.u32 %s42, 1
        %s240 = scalar_lea.sflag [#allocation3], %s239
        %s241 = sand.u32 %s42, 1
        %s242 = smul.addr %s241, 32
        %s243 = scalar_lea.vmem [#allocation2], %s242
        %p244 = pneg %p55
        %p245 = pneg %p52
        %p246 = scmp.lt.s32.totalorder %s24, 3
        %s247 = scalar_select %p246, %s24, 3
        %p248 = scmp.lt.s32.totalorder %s25, 0
        %s249 = scalar_select %p248, %s25, 0
        %s250 = sadd.s32 %s249, %s247
        %s251 = scalar_lea.vmem %s1, %s250
        %p252 = pneg %p83
        %p253 = pneg %p80
        %p254 = scmp.lt.s32.totalorder %s24, 3
        %s255 = scalar_select %p254, %s24, 3
        %p256 = scmp.lt.s32.totalorder %s25, 0
        %s257 = scalar_select %p256, %s25, 0
        %s258 = sadd.s32 %s257, %s255
        %s259 = scalar_lea.vmem %s2, %s258
        %p260 = pneg %p111
        %p261 = pneg %p108
        %p262 = pneg %p139
        %p263 = pneg %p136
        %s264 = sand.u32 %s126, 1
        %s265 = scalar_lea.sflag [#allocation4], %s264
        %s266 = sand.u32 %s126, 1
        %s267 = smul.addr %s266, 32
        %s268 = scalar_lea.vmem [#allocation5], %s267
        %p269 = scmp.lt.s32.totalorder %s24, 3
        %s270 = scalar_select %p269, %s24, 3
        %p271 = scmp.lt.s32.totalorder %s25, 0
        %s272 = scalar_select %p271, %s25, 0
        %s273 = sadd.s32 %s272, %s270
        %s274 = scalar_lea.vmem %s1, %s273
        %p275 = scmp.lt.s32.totalorder %s24, 3
        %s276 = scalar_select %p275, %s24, 3
        %p277 = scmp.lt.s32.totalorder %s25, 0
        %s278 = scalar_select %p277, %s25, 0
        %s279 = sadd.s32 %s278, %s276
        %s280 = scalar_lea.vmem %s2, %s279
        %v281 = vld [vmem:[%s234] sm:$0xff]
        %v282 = vld [vmem:[%s234 + $0x8] sm:$0xff]
        %v283 = vld [vmem:[%s234 + $0x10] sm:$0xff]
        %v284 = vld [vmem:[%s234 + $0x18] sm:$0xff]
        %vm285 = vcmask 130048
        %v286 = vsel %vm285, %v281, 0.0
        %v287 = vsel %vm285, %v282, 0.0
        %v288 = vadd.f32 %v286, %v287
        %v289 = vrot.slane %v288, 4
        %v290 = vadd.f32 %v288, %v289
        %v291 = vrot.slane %v290, 2
        %v292 = vadd.f32 %v290, %v291
        %v293 = vrot.slane %v292, 1
        %v294 = vadd.f32 %v292, %v293
        %v295 = vsel %vm285, %v283, 0.0
        %v296 = vsel %vm285, %v284, 0.0
        %v297 = vadd.f32 %v295, %v296
        %v298 = vrot.slane %v297, 4
        %v299 = vadd.f32 %v297, %v298
        %v300 = vrot.slane %v299, 2
        %v301 = vadd.f32 %v299, %v300
        %v302 = vrot.slane %v301, 1
        %v303 = vadd.f32 %v301, %v302
        %v304 = vsel %vm285, %v294, 0.0
        %v305 = vsel %vm285, %v303, 0.0
        %v306 = vadd.f32 %v304, %v305
        %v307 = vmul.f32 %v306, 0.03125
        %v308 = vsub.f32 %v281, %v307
        %v309 = vsub.f32 %v282, %v307
        %v310 = vsub.f32 %v283, %v307
        %v311 = vsub.f32 %v284, %v307
        %v312 = vmul.f32 %v308, %v308
        %v313 = vmul.f32 %v309, %v309
        %v314 = vmul.f32 %v310, %v310
        %v315 = vmul.f32 %v311, %v311
        %v316 = vsel %vm285, %v312, 0.0
        %v317 = vsel %vm285, %v313, 0.0
        %v318 = vadd.f32 %v316, %v317
        %v319 = vrot.slane %v318, 4
        %v320 = vadd.f32 %v318, %v319
        %v321 = vrot.slane %v320, 2
        %v322 = vadd.f32 %v320, %v321
        %v323 = vrot.slane %v322, 1
        %v324 = vadd.f32 %v322, %v323
        %v325 = vsel %vm285, %v314, 0.0
        %v326 = vsel %vm285, %v315, 0.0
        %v327 = vadd.f32 %v325, %v326
        %v328 = vrot.slane %v327, 4
        %v329 = vadd.f32 %v327, %v328
        %v330 = vrot.slane %v329, 2
        %v331 = vadd.f32 %v329, %v330
        %v332 = vrot.slane %v331, 1
        %v333 = vadd.f32 %v331, %v332
        %v334 = vsel %vm285, %v324, 0.0
        %v335 = vsel %vm285, %v333, 0.0
        %v336 = vadd.f32 %v334, %v335
        %v337 = vmul.f32 %v336, 0.03125
        %v338 = vadd.f32 %v337, 1e-05
        %v339 = vrsqrt.pop %v338
        %v340 = vld [vmem:[%s274] sm:$0x1]
        %v341 = vmul.f32 %v339, %v340
        %v342 = vld [vmem:[%s280] sm:$0x1]
        %v343 = vmul.f32 %v307, %v341
        %v344 = vsub.f32 %v342, %v343
        %v345 = vlaneseq
        %v346 = vshrl.u32 %v345, 7
        %v347 = vsub.s32 0, %v346
        %v348 = vrot.slane %v341, %v347
        %v349 = vmul.f32 %v281, %v348
        %v350 = vmul.f32 %v282, %v348
        %v351 = vmul.f32 %v283, %v348
        %v352 = vmul.f32 %v284, %v348
        %v354 = vlaneseq
        %v355 = vshrl.u32 %v354, 7
        %v356 = vsub.s32 0, %v355
        %v357 = vrot.slane %v344, %v356
        %v359 = vadd.f32 %v349, %v357
        %v360 = vadd.f32 %v350, %v357
        %v361 = vadd.f32 %v351, %v357
        %v362 = vadd.f32 %v352, %v357
        %363 = vst.msk [vmem:[%s268] sm:$0xff] %vm285, %v359
        %364 = vst.msk [vmem:[%s268 + $0x8] sm:$0xff] %vm285, %v360
        %365 = vst.msk [vmem:[%s268 + $0x10] sm:$0xff] %vm285, %v361
        %366 = vst.msk [vmem:[%s268 + $0x18] sm:$0xff] %vm285, %v362
        %s367 = sand.u32 %s126, 1
        %s368 = scalar_lea.sflag [#allocation4], %s367
        %s369 = sand.u32 %s126, 1
        %s370 = smul.addr %s369, 32
        %s371 = scalar_lea.vmem [#allocation5], %s370
        // Predicated region
        $region37: #{channelwise_batchnorm.1} parent=31 // pred_check
          %p372 = pneg %p136
        $region38: #{channelwise_batchnorm.1} parent=31 // pred_check_branch
          %374 = sbr.rel (%p372) target = $region40
        $region39: #{channelwise_batchnorm.1} parent=31 // pred_region
          #allocation9 [shape = 'u32[6]{0}', space=smem, size = 0x18, scoped, tag = 'DMA stride descriptor']
          %s376 = ssub.s32 512, 512
          %377 = vsyncadd %s368, %s376
          %s378 = smul.addr %s24, 2
          %s379 = sadd.s32 %s25, %s378
          %s380 = smul.addr %s379, 128
          %s381 = scalar_lea.hbm %s3, %s380
          %s383 = sshll.u32 1, 14
          %s384 = sxor.u32 4294967295, %s383
          %s387 = sshll.u32 7, 18
          %s388 = sxor.u32 4294967295, %s387
          %s389 = sand.u32 0, %s388
          %s391 = sor.u32 %s389, 0
          %s393 = sshll.u32 3, 24
          %s394 = sxor.u32 4294967295, %s393
          %s395 = sand.u32 %s391, %s394
          %s397 = sor.u32 %s395, 0
          %s398 = sshll.u32 %s371, 4
          %s399 = int_to_ptr.vmem [resolvable:$true] %s398
          %405 = sst [smem:[#allocation9]] 256
          %s406 = scalar_lea.smem [#allocation9], 1
          %407 = sst [smem:[%s406]] 1024
          %s408 = scalar_lea.smem [#allocation9], 2
          %409 = sst [smem:[%s408]] 2
          %s410 = scalar_lea.smem [#allocation9], 3
          %411 = sst [smem:[%s410]] 128
          %s412 = scalar_lea.smem [#allocation9], 4
          %413 = sst [smem:[%s412]] 128
          %s414 = scalar_lea.smem [#allocation9], 5
          %415 = sst [smem:[%s414]] 8
          %417 = dma.general %s399, 512, %s381, %s368, [#allocation8], [#allocation9], %s397, 0
        $region40: #{channelwise_batchnorm.1} parent=31 // pred_fallthru
          _
      $region32: #{channelwise_batchnorm.1} parent=5 // pred_fallthru
        _
      %p418 = scmp.le.s32.totalorder 2, %s15
      // Predicated region
      $region41: #{channelwise_batchnorm.1} parent=5 // pred_check
        %p419 = pneg %p418
      $region42: #{channelwise_batchnorm.1} parent=5 // pred_check_branch
        %421 = sbr.rel (%p419) target = $region44
      $region43: #{channelwise_batchnorm.1} parent=5 // pred_region
        %s422 = ssub.s32 %s15, 2
        // Predicated region
        $region45: #{channelwise_batchnorm.1} parent=43 // pred_check
          %p423 = pneg %p142
        $region46: #{channelwise_batchnorm.1} parent=43 // pred_check_branch
          %425 = sbr.rel (%p423) target = $region48
        $region47: #{channelwise_batchnorm.1} parent=43 // pred_region
          %s426 = sand.u32 %s127, 1
          %s427 = scalar_lea.sflag [#allocation4], %s426
          %s428 = sand.u32 %s127, 1
          %s429 = smul.addr %s428, 32
          %s430 = scalar_lea.vmem [#allocation5], %s429
          %431 = dma.done %s427, 512
        $region48: #{channelwise_batchnorm.1} parent=43 // pred_fallthru
          _
      $region44: #{channelwise_batchnorm.1} parent=5 // pred_fallthru
        _
    $region6: #{channelwise_batchnorm.1} parent=1 // loop_footer
      %s19 = sadd.s32 1, %s15
    $region7: #{channelwise_batchnorm.1} parent=1 // loop_footer_branch
      %14 = sbr.rel target = $region3
    $region8: #{channelwise_batchnorm.1} parent=1 // loop_exit
      _
    %432 = vsyncpa [#allocation3], 1
    %s433 = scalar_lea.sflag [#allocation3], 1
    %434 = vsyncpa %s433, 1
    %435 = vsyncpa [#allocation4], 1
    %s436 = scalar_lea.sflag [#allocation4], 1
    %437 = vsyncpa %s436, 1

</llo_original>
